<compile_context>
chip_gen: v7x
topology: tpu7x:2x2x1
jax: 0.10.0
libtpu: 0.0.40
codegen_flags: <defaults>
</compile_context>

<pallas_src>
import jax
import jax.numpy as jnp
from jax.experimental import pallas as pl
from jax.experimental.pallas import tpu as pltpu


def _round_up(x, m):
    return ((x + m - 1) // m) * m


# ----------------------------------------------------------------------------
# Fused kernel: multi-hot embedding gather -> (BN-folded) Linear/ReLU x2 -> Linear
#               -> sigmoid, all lane-dense (every feature dim padded to 128).
# ----------------------------------------------------------------------------
def make_tabular_kernel(col_offsets, c_pad):
    """col_offsets: static per-column row offsets into the stacked table."""

    def kernel(idx_ref, t_ref, w1_ref, b1_ref, w2_ref, b2_ref, w3_ref, b3_ref,
               o_ref):
        tm = idx_ref.shape[0]
        iota = jax.lax.broadcasted_iota(jnp.int32, (tm, c_pad), 1)

        # Multi-hot: one hot row per categorical column; columns occupy disjoint
        # ranges of the stacked table, so multihot @ T == concat of per-column
        # embedding lookups (bit-exact).
        mh = None
        for i, off in enumerate(col_offsets):
            gcol = idx_ref[:, i:i + 1] + off                  # [tm, 1] int32
            hot = (iota == gcol).astype(jnp.float32)          # [tm, c_pad]
            mh = hot if mh is None else mh + hot

        # Embedding gather + concat (MXU).
        x = jnp.dot(mh, t_ref[...], preferred_element_type=jnp.float32)

        # Linear (BN0 folded) -> ReLU   (Dropout = identity in eval mode)
        h = jnp.dot(x, w1_ref[...], preferred_element_type=jnp.float32) + b1_ref[...]
        h = jnp.maximum(h, 0.0)

        # Linear (BN1 folded) -> ReLU
        h = jnp.dot(h, w2_ref[...], preferred_element_type=jnp.float32) + b2_ref[...]
        h = jnp.maximum(h, 0.0)

        # Final Linear (BN2 folded) -> Sigmoid, written into a lane-dense slab.
        logits = jnp.dot(h, w3_ref[...], preferred_element_type=jnp.float32) + b3_ref[...]
        o_ref[...] = jax.nn.sigmoid(logits)

    return kernel


def fold_bn(gamma, beta, running_mean, running_var, eps=1e-5):
    """Fold BatchNorm1d (eval mode) into y = x*scale + bias."""
    scale = gamma / jnp.sqrt(running_var + eps)
    bias = beta - running_mean * scale
    return scale, bias


# ----------------------------------------------------------------------------
# One-time parameter preparation: BN folding, block-diagonal table, 128-padding.
# ----------------------------------------------------------------------------
def prepare_kernel_params(params, embed_details):
    cards = [c for c, _ in embed_details]
    dims = [d for _, d in embed_details]
    E, C = sum(dims), sum(cards)
    H = params["w1"].shape[1]
    O = params["w3"].shape[1]

    c_pad = _round_up(C, 128)
    e_pad = _round_up(E, 128)
    h_pad = _round_up(H, 128)
    o_pad = _round_up(O, 128)

    # Block-diagonal stacked embedding table: multihot @ T == gather + concat.
    T = jnp.zeros((c_pad, e_pad), jnp.float32)
    col_offsets = []
    c_off = e_off = 0
    for (card, dim), tbl in zip(embed_details, params["emb_tables"]):
        col_offsets.append(c_off)
        T = T.at[c_off:c_off + card, e_off:e_off + dim].set(tbl.astype(jnp.float32))
        c_off += card
        e_off += dim

    s0, b0 = fold_bn(params["bn0_g"], params["bn0_b"],
                     params["bn0_rm"], params["bn0_rv"])
    s1, bb1 = fold_bn(params["bn1_g"], params["bn1_b"],
                      params["bn1_rm"], params["bn1_rv"])
    s2, bb2 = fold_bn(params["bn2_g"], params["bn2_b"],
                      params["bn2_rm"], params["bn2_rv"])

    def fold_into_linear(w, b, scale, shift):
        # (x*scale + shift) @ w + b == x @ (diag(scale) w) + (shift @ w + b)
        wf = (w.astype(jnp.float32) * scale[:, None]).astype(jnp.float32)
        bf = (b.astype(jnp.float32) + shift @ w.astype(jnp.float32))
        return wf, bf

    w1f, b1f = fold_into_linear(params["w1"], params["b1"], s0, b0)
    w2f, b2f = fold_into_linear(params["w2"], params["b2"], s1, bb1)
    w3f, b3f = fold_into_linear(params["w3"], params["b3"], s2, bb2)

    def pad2(w, rows, cols):
        return jnp.pad(w, ((0, rows - w.shape[0]), (0, cols - w.shape[1])))

    def pad_row(b, cols):
        return jnp.pad(b.reshape(1, -1), ((0, 0), (0, cols - b.shape[0])))

    return dict(
        t=T,
        w1=pad2(w1f, e_pad, h_pad), b1=pad_row(b1f, h_pad),
        w2=pad2(w2f, h_pad, h_pad), b2=pad_row(b2f, h_pad),
        w3=pad2(w3f, h_pad, o_pad), b3=pad_row(b3f, o_pad),
        col_offsets=tuple(int(c) for c in col_offsets),
        c_pad=c_pad, o_pad=o_pad, o=O,
    )


# ----------------------------------------------------------------------------
# Forward: pad batch, one pallas_call (batch-tiled, weights resident), slice.
# ----------------------------------------------------------------------------
def torch_tabular_forward(data, kp, *, max_tile=256):
    B, ncols = data.shape
    tm = min(max_tile, _round_up(B, 8))
    b_pad = _round_up(B, tm)

    idx = data.astype(jnp.int32)
    if b_pad != B:
        idx = jnp.pad(idx, ((0, b_pad - B), (0, 0)))   # index 0 is always in-range

    kernel = make_tabular_kernel(kp["col_offsets"], kp["c_pad"])

    def resident(arr):
        return pl.BlockSpec(arr.shape, lambda i: (0, 0))

    out = pl.pallas_call(
        kernel,
        out_shape=jax.ShapeDtypeStruct((b_pad, kp["o_pad"]), jnp.float32),
        grid=(b_pad // tm,),
        in_specs=[
            pl.BlockSpec((tm, ncols), lambda i: (i, 0)),   # categorical indices
            resident(kp["t"]),
            resident(kp["w1"]), resident(kp["b1"]),
            resident(kp["w2"]), resident(kp["b2"]),
            resident(kp["w3"]), resident(kp["b3"]),
        ],
        out_specs=pl.BlockSpec((tm, kp["o_pad"]), lambda i: (i, 0)),
        compiler_params=pltpu.CompilerParams(
            dimension_semantics=("parallel",)),
    )(idx, kp["t"], kp["w1"], kp["b1"], kp["w2"], kp["b2"], kp["w3"], kp["b3"])

    return out[:B, :kp["o"]]


# ----------------------------------------------------------------------------
# Pure-JAX reference with the ORIGINAL (unfolded) math for correctness check.
# ----------------------------------------------------------------------------
def reference_forward(data, params):
    emb_cols = [table[data[:, i]] for i, table in enumerate(params["emb_tables"])]
    x = jnp.concatenate(emb_cols, axis=1).astype(jnp.float32)
    s0, b0 = fold_bn(params["bn0_g"], params["bn0_b"], params["bn0_rm"], params["bn0_rv"])
    s1, bb1 = fold_bn(params["bn1_g"], params["bn1_b"], params["bn1_rm"], params["bn1_rv"])
    s2, bb2 = fold_bn(params["bn2_g"], params["bn2_b"], params["bn2_rm"], params["bn2_rv"])
    h = x * s0 + b0
    h = jnp.maximum(h @ params["w1"] + params["b1"], 0.0) * s1 + bb1
    h = jnp.maximum(h @ params["w2"] + params["b2"], 0.0) * s2 + bb2
    return jax.nn.sigmoid(h @ params["w3"] + params["b3"])


# ----------------------------------------------------------------------------
# Deterministic parameter init (synthetic — no checkpoint loading).
# ----------------------------------------------------------------------------
def init_params(key, embed_details, linear_layer_sz, output_layer_sz):
    keys = jax.random.split(key, 16)
    E = sum(d for _, d in embed_details)
    H, O = linear_layer_sz, output_layer_sz

    emb_tables = []
    for i, (card, dim) in enumerate(embed_details):
        emb_tables.append(
            jax.random.normal(jax.random.fold_in(keys[0], i), (card, dim), jnp.float32) * 0.1
        )

    def bn(kg, kb, km, kv, n):
        return (
            1.0 + 0.1 * jax.random.normal(kg, (n,), jnp.float32),   # gamma
            0.1 * jax.random.normal(kb, (n,), jnp.float32),         # beta
            0.05 * jax.random.normal(km, (n,), jnp.float32),        # running_mean
            1.0 + 0.1 * jax.random.uniform(kv, (n,), jnp.float32),  # running_var
        )

    bn0_g, bn0_b, bn0_rm, bn0_rv = bn(keys[1], keys[2], keys[3], keys[4], E)
    bn1_g, bn1_b, bn1_rm, bn1_rv = bn(keys[5], keys[6], keys[7], keys[8], H)
    bn2_g, bn2_b, bn2_rm, bn2_rv = bn(keys[9], keys[10], keys[11], keys[12], H)

    # nn.Linear weights are (out, in) in PyTorch; stored pre-transposed (in, out).
    w1 = jax.random.normal(keys[13], (E, H), jnp.float32) * (1.0 / jnp.sqrt(E))
    b1 = 0.01 * jax.random.normal(jax.random.fold_in(keys[13], 1), (H,), jnp.float32)
    w2 = jax.random.normal(keys[14], (H, H), jnp.float32) * (1.0 / jnp.sqrt(H))
    b2 = 0.01 * jax.random.normal(jax.random.fold_in(keys[14], 1), (H,), jnp.float32)
    w3 = jax.random.normal(keys[15], (H, O), jnp.float32) * (1.0 / jnp.sqrt(H))
    b3 = 0.01 * jax.random.normal(jax.random.fold_in(keys[15], 1), (O,), jnp.float32)

    return dict(
        emb_tables=emb_tables,
        bn0_g=bn0_g, bn0_b=bn0_b, bn0_rm=bn0_rm, bn0_rv=bn0_rv,
        w1=w1, b1=b1, bn1_g=bn1_g, bn1_b=bn1_b, bn1_rm=bn1_rm, bn1_rv=bn1_rv,
        w2=w2, b2=b2, bn2_g=bn2_g, bn2_b=bn2_b, bn2_rm=bn2_rm, bn2_rv=bn2_rv,
        w3=w3, b3=b3,
    )


if __name__ == "__main__":
    # Small tabular config: 3 categorical columns.
    embed_details = [(10, 4), (7, 8), (12, 4)]   # (cardinality, emb_sz)
    dropouts = 0.1                               # identity in eval mode
    linear_layer_sz = 32
    output_layer_sz = 1
    batch = 8

    key = jax.random.PRNGKey(0)
    pkey, dkey = jax.random.split(key)
    params = init_params(pkey, embed_details, linear_layer_sz, output_layer_sz)

    # Integer categorical inputs: data[:, i] in [0, cardinality_i)
    cols = []
    for i, (card, _) in enumerate(embed_details):
        cols.append(
            jax.random.randint(jax.random.fold_in(dkey, i), (batch, 1), 0, card, jnp.int32)
        )
    data = jnp.concatenate(cols, axis=1)   # [B, num_cols] int32

    # One-time parameter prep: BN folding + block-diag table + 128-lane padding.
    kparams = prepare_kernel_params(params, embed_details)

    out = torch_tabular_forward(data, kparams)
    jax.block_until_ready(out)

    ref = reference_forward(data, params)
    assert out.shape == (batch, output_layer_sz)
    assert jnp.allclose(out, ref, atol=1e-4, rtol=1e-4), (
        f"max abs diff = {jnp.max(jnp.abs(out - ref))}")

    print("KERNEL_OK")
</pallas_src>

<mosaic_0001>
module attributes {stable_mosaic.version = 11 : i64} {
  func.func @kernel(%arg0: i32, %arg1: memref<8x3xi32, #tpu.memory_space<vmem>>, %arg2: memref<128x128xf32, #tpu.memory_space<vmem>>, %arg3: memref<128x128xf32, #tpu.memory_space<vmem>>, %arg4: memref<1x128xf32, #tpu.memory_space<vmem>>, %arg5: memref<128x128xf32, #tpu.memory_space<vmem>>, %arg6: memref<1x128xf32, #tpu.memory_space<vmem>>, %arg7: memref<128x128xf32, #tpu.memory_space<vmem>>, %arg8: memref<1x128xf32, #tpu.memory_space<vmem>>, %arg9: memref<8x128xf32, #tpu.memory_space<vmem>>) attributes {dimension_semantics = [#tpu.dimension_semantics<parallel>], iteration_bounds = array<i64: 1>, scalar_prefetch = 0 : i64, scratch_operands = 0 : i64, tpu.core_type = #tpu.core_type<tc>, window_params = [{transform_indices = @transform_0, window_bounds = array<i64: 8, 3>}, {pipeline_mode = #tpu.pipeline_mode<synchronous>, transform_indices = @transform_1, window_bounds = array<i64: 128, 128>}, {pipeline_mode = #tpu.pipeline_mode<synchronous>, transform_indices = @transform_2, window_bounds = array<i64: 128, 128>}, {pipeline_mode = #tpu.pipeline_mode<synchronous>, transform_indices = @transform_3, window_bounds = array<i64: 1, 128>}, {pipeline_mode = #tpu.pipeline_mode<synchronous>, transform_indices = @transform_4, window_bounds = array<i64: 128, 128>}, {pipeline_mode = #tpu.pipeline_mode<synchronous>, transform_indices = @transform_5, window_bounds = array<i64: 1, 128>}, {pipeline_mode = #tpu.pipeline_mode<synchronous>, transform_indices = @transform_6, window_bounds = array<i64: 128, 128>}, {pipeline_mode = #tpu.pipeline_mode<synchronous>, transform_indices = @transform_7, window_bounds = array<i64: 1, 128>}, {transform_indices = @transform_8, window_bounds = array<i64: 8, 128>}]} {
    %0 = tpu.iota {dimensions = array<i32: 1>} : vector<8x128xi32>
    %c0 = arith.constant 0 : index
    %c0_0 = arith.constant 0 : index
    %1 = vector.load %arg1[%c0, %c0_0] : memref<8x3xi32, #tpu.memory_space<vmem>>, vector<8x1xi32>
    %c0_i32 = arith.constant 0 : i32
    %2 = vector.broadcast %c0_i32 : i32 to vector<8x1xi32>
    %3 = arith.addi %1, %2 : vector<8x1xi32>
    %4 = vector.broadcast %3 : vector<8x1xi32> to vector<8x128xi32>
    %5 = arith.cmpi eq, %0, %4 : vector<8x128xi32>
    %6 = arith.extui %5 : vector<8x128xi1> to vector<8x128xi32>
    %7 = arith.sitofp %6 : vector<8x128xi32> to vector<8x128xf32>
    %c0_1 = arith.constant 0 : index
    %c1 = arith.constant 1 : index
    %8 = vector.load %arg1[%c0_1, %c1] : memref<8x3xi32, #tpu.memory_space<vmem>>, vector<8x1xi32>
    %c10_i32 = arith.constant 10 : i32
    %9 = vector.broadcast %c10_i32 : i32 to vector<8x1xi32>
    %10 = arith.addi %8, %9 : vector<8x1xi32>
    %11 = vector.broadcast %10 : vector<8x1xi32> to vector<8x128xi32>
    %12 = arith.cmpi eq, %0, %11 : vector<8x128xi32>
    %13 = arith.extui %12 : vector<8x128xi1> to vector<8x128xi32>
    %14 = arith.sitofp %13 : vector<8x128xi32> to vector<8x128xf32>
    %15 = arith.addf %7, %14 : vector<8x128xf32>
    %c0_2 = arith.constant 0 : index
    %c2 = arith.constant 2 : index
    %16 = vector.load %arg1[%c0_2, %c2] : memref<8x3xi32, #tpu.memory_space<vmem>>, vector<8x1xi32>
    %c17_i32 = arith.constant 17 : i32
    %17 = vector.broadcast %c17_i32 : i32 to vector<8x1xi32>
    %18 = arith.addi %16, %17 : vector<8x1xi32>
    %19 = vector.broadcast %18 : vector<8x1xi32> to vector<8x128xi32>
    %20 = arith.cmpi eq, %0, %19 : vector<8x128xi32>
    %21 = arith.extui %20 : vector<8x128xi1> to vector<8x128xi32>
    %22 = arith.sitofp %21 : vector<8x128xi32> to vector<8x128xf32>
    %23 = arith.addf %15, %22 : vector<8x128xf32>
    %c0_3 = arith.constant 0 : index
    %c0_4 = arith.constant 0 : index
    %24 = vector.load %arg2[%c0_3, %c0_4] : memref<128x128xf32, #tpu.memory_space<vmem>>, vector<128x128xf32>
    %cst = arith.constant dense<0.000000e+00> : vector<8x128xf32>
    %25 = tpu.matmul %23, %24, %cst {dimension_numbers = #tpu.dot_dimension_numbers<[1], [0], [0], [1], [0, 0, 1, 1], [], []>} : vector<8x128xf32>, vector<128x128xf32>, vector<8x128xf32> -> vector<8x128xf32>
    %c0_5 = arith.constant 0 : index
    %c0_6 = arith.constant 0 : index
    %26 = vector.load %arg3[%c0_5, %c0_6] : memref<128x128xf32, #tpu.memory_space<vmem>>, vector<128x128xf32>
    %cst_7 = arith.constant dense<0.000000e+00> : vector<8x128xf32>
    %27 = tpu.matmul %25, %26, %cst_7 {dimension_numbers = #tpu.dot_dimension_numbers<[1], [0], [0], [1], [0, 0, 1, 1], [], []>} : vector<8x128xf32>, vector<128x128xf32>, vector<8x128xf32> -> vector<8x128xf32>
    %c0_8 = arith.constant 0 : index
    %c0_9 = arith.constant 0 : index
    %28 = vector.load %arg4[%c0_8, %c0_9] : memref<1x128xf32, #tpu.memory_space<vmem>>, vector<1x128xf32>
    %29 = vector.broadcast %28 : vector<1x128xf32> to vector<8x128xf32>
    %30 = arith.addf %27, %29 : vector<8x128xf32>
    %cst_10 = arith.constant 0.000000e+00 : f32
    %31 = vector.broadcast %cst_10 : f32 to vector<8x128xf32>
    %32 = arith.maximumf %30, %31 : vector<8x128xf32>
    %c0_11 = arith.constant 0 : index
    %c0_12 = arith.constant 0 : index
    %33 = vector.load %arg5[%c0_11, %c0_12] : memref<128x128xf32, #tpu.memory_space<vmem>>, vector<128x128xf32>
    %cst_13 = arith.constant dense<0.000000e+00> : vector<8x128xf32>
    %34 = tpu.matmul %32, %33, %cst_13 {dimension_numbers = #tpu.dot_dimension_numbers<[1], [0], [0], [1], [0, 0, 1, 1], [], []>} : vector<8x128xf32>, vector<128x128xf32>, vector<8x128xf32> -> vector<8x128xf32>
    %c0_14 = arith.constant 0 : index
    %c0_15 = arith.constant 0 : index
    %35 = vector.load %arg6[%c0_14, %c0_15] : memref<1x128xf32, #tpu.memory_space<vmem>>, vector<1x128xf32>
    %36 = vector.broadcast %35 : vector<1x128xf32> to vector<8x128xf32>
    %37 = arith.addf %34, %36 : vector<8x128xf32>
    %cst_16 = arith.constant 0.000000e+00 : f32
    %38 = vector.broadcast %cst_16 : f32 to vector<8x128xf32>
    %39 = arith.maximumf %37, %38 : vector<8x128xf32>
    %c0_17 = arith.constant 0 : index
    %c0_18 = arith.constant 0 : index
    %40 = vector.load %arg7[%c0_17, %c0_18] : memref<128x128xf32, #tpu.memory_space<vmem>>, vector<128x128xf32>
    %cst_19 = arith.constant dense<0.000000e+00> : vector<8x128xf32>
    %41 = tpu.matmul %39, %40, %cst_19 {dimension_numbers = #tpu.dot_dimension_numbers<[1], [0], [0], [1], [0, 0, 1, 1], [], []>} : vector<8x128xf32>, vector<128x128xf32>, vector<8x128xf32> -> vector<8x128xf32>
    %c0_20 = arith.constant 0 : index
    %c0_21 = arith.constant 0 : index
    %42 = vector.load %arg8[%c0_20, %c0_21] : memref<1x128xf32, #tpu.memory_space<vmem>>, vector<1x128xf32>
    %43 = vector.broadcast %42 : vector<1x128xf32> to vector<8x128xf32>
    %44 = arith.addf %41, %43 : vector<8x128xf32>
    %45 = arith.negf %44 : vector<8x128xf32>
    %46 = math.exp %45 : vector<8x128xf32>
    %cst_22 = arith.constant 1.000000e+00 : f32
    %47 = vector.broadcast %cst_22 : f32 to vector<8x128xf32>
    %48 = arith.addf %47, %46 : vector<8x128xf32>
    %49 = arith.divf %47, %48 : vector<8x128xf32>
    %c0_23 = arith.constant 0 : index
    %c0_24 = arith.constant 0 : index
    %50 = vector.load %arg9[%c0_23, %c0_24] : memref<8x128xf32, #tpu.memory_space<vmem>>, vector<8x128xf32>
    tpu.vector_store %arg9[%c0_23, %c0_24], %49 {strides = array<i32>} : memref<8x128xf32, #tpu.memory_space<vmem>>, vector<8x128xf32>,
    return
  }
  func.func @transform_0(%arg0: i32) -> (i32, i32) {
    %c0_i32 = arith.constant 0 : i32
    %c0_i32_0 = arith.constant 0 : i32
    return %arg0, %c0_i32 : i32, i32
  }
  func.func @transform_1(%arg0: i32) -> (i32, i32) {
    %c0_i32 = arith.constant 0 : i32
    %c0_i32_0 = arith.constant 0 : i32
    %c0_i32_1 = arith.constant 0 : i32
    return %c0_i32, %c0_i32_0 : i32, i32
  }
  func.func @transform_2(%arg0: i32) -> (i32, i32) {
    %c0_i32 = arith.constant 0 : i32
    %c0_i32_0 = arith.constant 0 : i32
    %c0_i32_1 = arith.constant 0 : i32
    return %c0_i32, %c0_i32_0 : i32, i32
  }
  func.func @transform_3(%arg0: i32) -> (i32, i32) {
    %c0_i32 = arith.constant 0 : i32
    %c0_i32_0 = arith.constant 0 : i32
    %c0_i32_1 = arith.constant 0 : i32
    return %c0_i32, %c0_i32_0 : i32, i32
  }
  func.func @transform_4(%arg0: i32) -> (i32, i32) {
    %c0_i32 = arith.constant 0 : i32
    %c0_i32_0 = arith.constant 0 : i32
    %c0_i32_1 = arith.constant 0 : i32
    return %c0_i32, %c0_i32_0 : i32, i32
  }
  func.func @transform_5(%arg0: i32) -> (i32, i32) {
    %c0_i32 = arith.constant 0 : i32
    %c0_i32_0 = arith.constant 0 : i32
    %c0_i32_1 = arith.constant 0 : i32
    return %c0_i32, %c0_i32_0 : i32, i32
  }
  func.func @transform_6(%arg0: i32) -> (i32, i32) {
    %c0_i32 = arith.constant 0 : i32
    %c0_i32_0 = arith.constant 0 : i32
    %c0_i32_1 = arith.constant 0 : i32
    return %c0_i32, %c0_i32_0 : i32, i32
  }
  func.func @transform_7(%arg0: i32) -> (i32, i32) {
    %c0_i32 = arith.constant 0 : i32
    %c0_i32_0 = arith.constant 0 : i32
    %c0_i32_1 = arith.constant 0 : i32
    return %c0_i32, %c0_i32_0 : i32, i32
  }
  func.func @transform_8(%arg0: i32) -> (i32, i32) {
    %c0_i32 = arith.constant 0 : i32
    %c0_i32_0 = arith.constant 0 : i32
    return %arg0, %c0_i32 : i32, i32
  }
}

</mosaic_0001>

<llo_original>
// kernel: tpu_custom_call.1
$region0: #{tpu_custom_call.1}
  #allocation0 [shape = 'u32[]', space=smem, size = 0x4, offset = 0x4, fixed_abs, tag = 'smem constant byte address 0x4 - core index']
  #allocation1 [shape = 'u32[144,128]{1,0:T(1,128)}', space=vmem, size = 0x12000, scoped, tag = 'internal scratch']
  %s0 = inlined_call_operand.vmem [shape: s32[8,3], index: 0, kind: input, shape index: {}]
  %s1 = inlined_call_operand.hbm [shape: f32[128,128], index: 1, kind: input, shape index: {}]
  %s2 = inlined_call_operand.hbm [shape: f32[128,128], index: 2, kind: input, shape index: {}]
  %s3 = inlined_call_operand.vmem [shape: f32[1,128], index: 3, kind: input, shape index: {}]
  %s4 = inlined_call_operand.hbm [shape: f32[128,128], index: 4, kind: input, shape index: {}]
  %s5 = inlined_call_operand.vmem [shape: f32[1,128], index: 5, kind: input, shape index: {}]
  %s6 = inlined_call_operand.hbm [shape: f32[128,128], index: 6, kind: input, shape index: {}]
  %s7 = inlined_call_operand.vmem [shape: f32[1,128], index: 7, kind: input, shape index: {}]
  %s8 = inlined_call_operand.hbm [shape: f32[8,128], index: 8, kind: output, shape index: {}]
  %s9 = sld [smem:[#allocation0]]
  $region58: #{tpu_custom_call.1} parent=0
    _
  %s11 = ssub.s32 1, %s9
  %s12 = scalar_select 0, %s11, %s9
  $region1: #{tpu_custom_call.1} parent=0
    #allocation2 [shape = 'u8[65536]{0}', space=vmem, size = 0x10000, scoped, tag = 'input window, operand 1, single buffered']
    #allocation3 [shape = 's32[1]{0}', space=sflag, size = 0x4, scoped, tag = 'scoped memory for tpu_custom_call.1']
    #allocation4 [shape = 's32[1]{0}', space=sflag, size = 0x4, scoped, tag = 'scoped memory for tpu_custom_call.1']
    #allocation5 [shape = 'u8[65536]{0}', space=vmem, size = 0x10000, scoped, tag = 'input window, operand 2, single buffered']
    #allocation6 [shape = 's32[1]{0}', space=sflag, size = 0x4, scoped, tag = 'scoped memory for tpu_custom_call.1']
    #allocation7 [shape = 'u8[65536]{0}', space=vmem, size = 0x10000, scoped, tag = 'input window, operand 4, single buffered']
    #allocation8 [shape = 'u8[65536]{0}', space=vmem, size = 0x10000, scoped, tag = 'input window, operand 6, single buffered']
    #allocation9 [shape = 's32[1]{0}', space=sflag, size = 0x4, scoped, tag = 'scoped memory for tpu_custom_call.1']
    #allocation10 [shape = 'u8[4096]{0}', space=vmem, size = 0x1000, scoped, tag = 'output window, operand 0, single buffered']
    %13 = vsyncpa [#allocation3], 0
    %14 = vsyncpa [#allocation6], 0
    %15 = vsyncpa [#allocation9], 0
    %16 = vsyncpa [#allocation4], 0
    // Predicated region
    $region2: #{tpu_custom_call.1} parent=1 // pred_check
      _
    $region3: #{tpu_custom_call.1} parent=1 // pred_check_branch
      %18 = sbr.rel (0) target = $region5
    $region4: #{tpu_custom_call.1} parent=1 // pred_region
      _
    $region5: #{tpu_custom_call.1} parent=1 // pred_fallthru
      _
    // Predicated region
    $region6: #{tpu_custom_call.1} parent=1 // pred_check
      _
    $region7: #{tpu_custom_call.1} parent=1 // pred_check_branch
      %20 = sbr.rel (0) target = $region9
    $region8: #{tpu_custom_call.1} parent=1 // pred_region
      %s22 = ssub.s32 2048, 2048
      %23 = vsyncadd [#allocation3], %s22
      %s24 = sshll.u32 [#allocation2], 4
      %s25 = int_to_ptr.vmem [resolvable:$true] %s24
      %30 = dma.hbm_to_vmem [thread:$0]  %s1, 2048, %s25, [#allocation3], 128, 128, 8
    $region9: #{tpu_custom_call.1} parent=1 // pred_fallthru
      _
    // Predicated region
    $region10: #{tpu_custom_call.1} parent=1 // pred_check
      _
    $region11: #{tpu_custom_call.1} parent=1 // pred_check_branch
      %32 = sbr.rel (0) target = $region13
    $region12: #{tpu_custom_call.1} parent=1 // pred_region
      %s34 = ssub.s32 2048, 2048
      %35 = vsyncadd [#allocation6], %s34
      %s36 = sshll.u32 [#allocation5], 4
      %s37 = int_to_ptr.vmem [resolvable:$true] %s36
      %42 = dma.hbm_to_vmem [thread:$0]  %s2, 2048, %s37, [#allocation6], 128, 128, 8
    $region13: #{tpu_custom_call.1} parent=1 // pred_fallthru
      _
    // Predicated region
    $region14: #{tpu_custom_call.1} parent=1 // pred_check
      _
    $region15: #{tpu_custom_call.1} parent=1 // pred_check_branch
      %44 = sbr.rel (0) target = $region17
    $region16: #{tpu_custom_call.1} parent=1 // pred_region
      _
    $region17: #{tpu_custom_call.1} parent=1 // pred_fallthru
      _
    // Predicated region
    $region18: #{tpu_custom_call.1} parent=1 // pred_check
      _
    $region19: #{tpu_custom_call.1} parent=1 // pred_check_branch
      %46 = sbr.rel (0) target = $region21
    $region20: #{tpu_custom_call.1} parent=1 // pred_region
      %s48 = ssub.s32 2048, 2048
      %49 = vsyncadd [#allocation6], %s48
      %s50 = sshll.u32 [#allocation7], 4
      %s51 = int_to_ptr.vmem [resolvable:$true] %s50
      %56 = dma.hbm_to_vmem [thread:$0]  %s4, 2048, %s51, [#allocation6], 128, 128, 8
    $region21: #{tpu_custom_call.1} parent=1 // pred_fallthru
      _
    // Predicated region
    $region22: #{tpu_custom_call.1} parent=1 // pred_check
      _
    $region23: #{tpu_custom_call.1} parent=1 // pred_check_branch
      %58 = sbr.rel (0) target = $region25
    $region24: #{tpu_custom_call.1} parent=1 // pred_region
      _
    $region25: #{tpu_custom_call.1} parent=1 // pred_fallthru
      _
    // Predicated region
    $region26: #{tpu_custom_call.1} parent=1 // pred_check
      _
    $region27: #{tpu_custom_call.1} parent=1 // pred_check_branch
      %60 = sbr.rel (0) target = $region29
    $region28: #{tpu_custom_call.1} parent=1 // pred_region
      %s62 = ssub.s32 2048, 2048
      %63 = vsyncadd [#allocation9], %s62
      %s64 = sshll.u32 [#allocation8], 4
      %s65 = int_to_ptr.vmem [resolvable:$true] %s64
      %70 = dma.hbm_to_vmem [thread:$0]  %s6, 2048, %s65, [#allocation9], 128, 128, 8
    $region29: #{tpu_custom_call.1} parent=1 // pred_fallthru
      _
    // Predicated region
    $region30: #{tpu_custom_call.1} parent=1 // pred_check
      _
    $region31: #{tpu_custom_call.1} parent=1 // pred_check_branch
      %72 = sbr.rel (0) target = $region33
    $region32: #{tpu_custom_call.1} parent=1 // pred_region
      _
    $region33: #{tpu_custom_call.1} parent=1 // pred_fallthru
      _
    // Predicated region
    $region34: #{tpu_custom_call.1} parent=1 // pred_check
      _
    $region35: #{tpu_custom_call.1} parent=1 // pred_check_branch
      %74 = sbr.rel (0) target = $region37
    $region36: #{tpu_custom_call.1} parent=1 // pred_region
      %75 = dma.done [#allocation3], 2048
    $region37: #{tpu_custom_call.1} parent=1 // pred_fallthru
      _
    // Predicated region
    $region38: #{tpu_custom_call.1} parent=1 // pred_check
      _
    $region39: #{tpu_custom_call.1} parent=1 // pred_check_branch
      %77 = sbr.rel (0) target = $region41
    $region40: #{tpu_custom_call.1} parent=1 // pred_region
      %78 = dma.done [#allocation6], 2048
    $region41: #{tpu_custom_call.1} parent=1 // pred_fallthru
      _
    // Predicated region
    $region42: #{tpu_custom_call.1} parent=1 // pred_check
      _
    $region43: #{tpu_custom_call.1} parent=1 // pred_check_branch
      %80 = sbr.rel (0) target = $region45
    $region44: #{tpu_custom_call.1} parent=1 // pred_region
      %81 = dma.done [#allocation6], 2048
    $region45: #{tpu_custom_call.1} parent=1 // pred_fallthru
      _
    // Predicated region
    $region46: #{tpu_custom_call.1} parent=1 // pred_check
      _
    $region47: #{tpu_custom_call.1} parent=1 // pred_check_branch
      %83 = sbr.rel (0) target = $region49
    $region48: #{tpu_custom_call.1} parent=1 // pred_region
      %84 = dma.done [#allocation9], 2048
    $region49: #{tpu_custom_call.1} parent=1 // pred_fallthru
      _
    %v85 = vlaneseq
    %v86 = vand.u32 %v85, 127
    %v87 = vld [vmem:[%s0] sm:$0xff]
    %88 = vset.pattern.permute.xlu0 0
    %89 = vperm.xlu0 %88, %v87
    %v90 = vpop.permute.xlu0 %89
    %vm91 = vcmp.eq.s32.totalorder %v86, %v90
    %v92 = vsel %vm91, 1, 0
    %v93 = vcvt.s32.f32 %v92
    %v94 = vadd.s32 %v87, 10
    %95 = vset.pattern.permute.xlu0 1
    %96 = vperm.xlu0 %95, %v94
    %v97 = vpop.permute.xlu0 %96
    %vm98 = vcmp.eq.s32.totalorder %v86, %v97
    %v99 = vsel %vm98, 1, 0
    %v100 = vcvt.s32.f32 %v99
    %v101 = vadd.f32 %v93, %v100
    %v102 = vadd.s32 %v87, 17
    %103 = vset.pattern.permute.xlu0 2
    %104 = vperm.xlu0 %103, %v102
    %v105 = vpop.permute.xlu0 %104
    %vm106 = vcmp.eq.s32.totalorder %v86, %v105
    %v107 = vsel %vm106, 1, 0
    %v108 = vcvt.s32.f32 %v107
    %v109 = vadd.f32 %v101, %v108
    %v110 = vld [vmem:[#allocation2] sm:$0xff]
    %v111 = vld [vmem:[#allocation2 + $0x8] sm:$0xff]
    %v112 = vld [vmem:[#allocation2 + $0x10] sm:$0xff]
    %v113 = vld [vmem:[#allocation2 + $0x18] sm:$0xff]
    %v114 = vld [vmem:[#allocation2 + $0x20] sm:$0xff]
    %v115 = vld [vmem:[#allocation2 + $0x28] sm:$0xff]
    %v116 = vld [vmem:[#allocation2 + $0x30] sm:$0xff]
    %v117 = vld [vmem:[#allocation2 + $0x38] sm:$0xff]
    %v118 = vld [vmem:[#allocation2 + $0x40] sm:$0xff]
    %v119 = vld [vmem:[#allocation2 + $0x48] sm:$0xff]
    %v120 = vld [vmem:[#allocation2 + $0x50] sm:$0xff]
    %v121 = vld [vmem:[#allocation2 + $0x58] sm:$0xff]
    %v122 = vld [vmem:[#allocation2 + $0x60] sm:$0xff]
    %v123 = vld [vmem:[#allocation2 + $0x68] sm:$0xff]
    %v124 = vld [vmem:[#allocation2 + $0x70] sm:$0xff]
    %v125 = vld [vmem:[#allocation2 + $0x78] sm:$0xff]
    %126 = vmatprep.subr.mxu0 0.0
    %127 = vmatpush1.msra.mxu0 %v110
    %128 = vmatprep.subr.mxu0 0.0
    %129 = vmatpush1.msra.mxu0 %v111
    %130 = vmatprep.subr.mxu0 0.0
    %131 = vmatpush1.msra.mxu0 %v112
    %132 = vmatprep.subr.mxu0 0.0
    %133 = vmatpush1.msra.mxu0 %v113
    %134 = vmatprep.subr.mxu0 0.0
    %135 = vmatpush1.msra.mxu0 %v114
    %136 = vmatprep.subr.mxu0 0.0
    %137 = vmatpush1.msra.mxu0 %v115
    %138 = vmatprep.subr.mxu0 0.0
    %139 = vmatpush1.msra.mxu0 %v116
    %140 = vmatprep.subr.mxu0 0.0
    %141 = vmatpush1.msra.mxu0 %v117
    %142 = vmatprep.subr.mxu0 0.0
    %143 = vmatpush1.msra.mxu0 %v118
    %144 = vmatprep.subr.mxu0 0.0
    %145 = vmatpush1.msra.mxu0 %v119
    %146 = vmatprep.subr.mxu0 0.0
    %147 = vmatpush1.msra.mxu0 %v120
    %148 = vmatprep.subr.mxu0 0.0
    %149 = vmatpush1.msra.mxu0 %v121
    %150 = vmatprep.subr.mxu0 0.0
    %151 = vmatpush1.msra.mxu0 %v122
    %152 = vmatprep.subr.mxu0 0.0
    %153 = vmatpush1.msra.mxu0 %v123
    %154 = vmatprep.subr.mxu0 0.0
    %155 = vmatpush1.msra.mxu0 %v124
    %156 = vmatprep.subr.mxu0 0.0
    %157 = vmatpush1.msra.mxu0 %v125
    %158 = vmatprep.subr.mxu0 0.0
    %159 = vmatpush1.msra.mxu0 0.0
    %160 = vmatprep.subr.mxu0 0.0
    %161 = vmatpush1.msra.mxu0 0.0
    %162 = vmatprep.subr.mxu0 0.0
    %163 = vmatpush1.msra.mxu0 0.0
    %164 = vmatprep.subr.mxu0 0.0
    %165 = vmatpush1.msra.mxu0 0.0
    %166 = vmatprep.subr.mxu0 0.0
    %167 = vmatpush1.msra.mxu0 0.0
    %168 = vmatprep.subr.mxu0 0.0
    %169 = vmatpush1.msra.mxu0 0.0
    %170 = vmatprep.subr.mxu0 0.0
    %171 = vmatpush1.msra.mxu0 0.0
    %172 = vmatprep.subr.mxu0 0.0
    %173 = vmatpush1.msra.mxu0 0.0
    %174 = vmatprep.subr.mxu0 0.0
    %175 = vmatpush1.msra.mxu0 0.0
    %176 = vmatprep.subr.mxu0 0.0
    %177 = vmatpush1.msra.mxu0 0.0
    %178 = vmatprep.subr.mxu0 0.0
    %179 = vmatpush1.msra.mxu0 0.0
    %180 = vmatprep.subr.mxu0 0.0
    %181 = vmatpush1.msra.mxu0 0.0
    %182 = vmatprep.subr.mxu0 0.0
    %183 = vmatpush1.msra.mxu0 0.0
    %184 = vmatprep.subr.mxu0 0.0
    %185 = vmatpush1.msra.mxu0 0.0
    %186 = vmatprep.subr.mxu0 0.0
    %187 = vmatpush1.msra.mxu0 0.0
    %188 = vmatprep.subr.mxu0 0.0
    %189 = vmatpush1.msra.mxu0 0.0
    %190 = vmatprep.mubr.f32.mxu0 0.0
    %191 = vmatmul.mubr.f32.gmra.mrb[0].mxu0 %v109
    %v192 = vpop.f32.mrb[0].mxu0
    %v193 = vadd.f32 0.0, %v192
    %v194 = vpop.f32.mrb[0].mxu0
    %195 = vdwg.mxu0
    %v196 = vld [vmem:[#allocation5] sm:$0xff]
    %v197 = vld [vmem:[#allocation5 + $0x8] sm:$0xff]
    %v198 = vld [vmem:[#allocation5 + $0x10] sm:$0xff]
    %v199 = vld [vmem:[#allocation5 + $0x18] sm:$0xff]
    %v200 = vld [vmem:[#allocation5 + $0x20] sm:$0xff]
    %v201 = vld [vmem:[#allocation5 + $0x28] sm:$0xff]
    %v202 = vld [vmem:[#allocation5 + $0x30] sm:$0xff]
    %v203 = vld [vmem:[#allocation5 + $0x38] sm:$0xff]
    %v204 = vld [vmem:[#allocation5 + $0x40] sm:$0xff]
    %v205 = vld [vmem:[#allocation5 + $0x48] sm:$0xff]
    %v206 = vld [vmem:[#allocation5 + $0x50] sm:$0xff]
    %v207 = vld [vmem:[#allocation5 + $0x58] sm:$0xff]
    %v208 = vld [vmem:[#allocation5 + $0x60] sm:$0xff]
    %v209 = vld [vmem:[#allocation5 + $0x68] sm:$0xff]
    %v210 = vld [vmem:[#allocation5 + $0x70] sm:$0xff]
    %v211 = vld [vmem:[#allocation5 + $0x78] sm:$0xff]
    %v212 = vld [vmem:[%s3] sm:$0x1]
    %v214 = vlaneseq
    %v215 = vshrl.u32 %v214, 7
    %v216 = vsub.s32 0, %v215
    %v217 = vrot.slane %v212, %v216
    %219 = vmatprep.subr.mxu0 0.0
    %220 = vmatpush1.msra.mxu0 %v196
    %221 = vmatprep.subr.mxu0 0.0
    %222 = vmatpush1.msra.mxu0 %v197
    %223 = vmatprep.subr.mxu0 0.0
    %224 = vmatpush1.msra.mxu0 %v198
    %225 = vmatprep.subr.mxu0 0.0
    %226 = vmatpush1.msra.mxu0 %v199
    %227 = vmatprep.subr.mxu0 0.0
    %228 = vmatpush1.msra.mxu0 %v200
    %229 = vmatprep.subr.mxu0 0.0
    %230 = vmatpush1.msra.mxu0 %v201
    %231 = vmatprep.subr.mxu0 0.0
    %232 = vmatpush1.msra.mxu0 %v202
    %233 = vmatprep.subr.mxu0 0.0
    %234 = vmatpush1.msra.mxu0 %v203
    %235 = vmatprep.subr.mxu0 0.0
    %236 = vmatpush1.msra.mxu0 %v204
    %237 = vmatprep.subr.mxu0 0.0
    %238 = vmatpush1.msra.mxu0 %v205
    %239 = vmatprep.subr.mxu0 0.0
    %240 = vmatpush1.msra.mxu0 %v206
    %241 = vmatprep.subr.mxu0 0.0
    %242 = vmatpush1.msra.mxu0 %v207
    %243 = vmatprep.subr.mxu0 0.0
    %244 = vmatpush1.msra.mxu0 %v208
    %245 = vmatprep.subr.mxu0 0.0
    %246 = vmatpush1.msra.mxu0 %v209
    %247 = vmatprep.subr.mxu0 0.0
    %248 = vmatpush1.msra.mxu0 %v210
    %249 = vmatprep.subr.mxu0 0.0
    %250 = vmatpush1.msra.mxu0 %v211
    %251 = vmatprep.subr.mxu0 0.0
    %252 = vmatpush1.msra.mxu0 0.0
    %253 = vmatprep.subr.mxu0 0.0
    %254 = vmatpush1.msra.mxu0 0.0
    %255 = vmatprep.subr.mxu0 0.0
    %256 = vmatpush1.msra.mxu0 0.0
    %257 = vmatprep.subr.mxu0 0.0
    %258 = vmatpush1.msra.mxu0 0.0
    %259 = vmatprep.subr.mxu0 0.0
    %260 = vmatpush1.msra.mxu0 0.0
    %261 = vmatprep.subr.mxu0 0.0
    %262 = vmatpush1.msra.mxu0 0.0
    %263 = vmatprep.subr.mxu0 0.0
    %264 = vmatpush1.msra.mxu0 0.0
    %265 = vmatprep.subr.mxu0 0.0
    %266 = vmatpush1.msra.mxu0 0.0
    %267 = vmatprep.subr.mxu0 0.0
    %268 = vmatpush1.msra.mxu0 0.0
    %269 = vmatprep.subr.mxu0 0.0
    %270 = vmatpush1.msra.mxu0 0.0
    %271 = vmatprep.subr.mxu0 0.0
    %272 = vmatpush1.msra.mxu0 0.0
    %273 = vmatprep.subr.mxu0 0.0
    %274 = vmatpush1.msra.mxu0 0.0
    %275 = vmatprep.subr.mxu0 0.0
    %276 = vmatpush1.msra.mxu0 0.0
    %277 = vmatprep.subr.mxu0 0.0
    %278 = vmatpush1.msra.mxu0 0.0
    %279 = vmatprep.subr.mxu0 0.0
    %280 = vmatpush1.msra.mxu0 0.0
    %281 = vmatprep.subr.mxu0 0.0
    %282 = vmatpush1.msra.mxu0 0.0
    %283 = vmatprep.mubr.f32.mxu0 0.0
    %284 = vmatmul.mubr.f32.gmra.mrb[0].mxu0 %v193
    %v285 = vpop.f32.mrb[0].mxu0
    %v286 = vadd.f32 %v217, %v285
    %v287 = vpop.f32.mrb[0].mxu0
    %288 = vdwg.mxu0
    %v289 = vmax.f32 %v286, 0.0
    %v290 = vld [vmem:[#allocation7] sm:$0xff]
    %v291 = vld [vmem:[#allocation7 + $0x8] sm:$0xff]
    %v292 = vld [vmem:[#allocation7 + $0x10] sm:$0xff]
    %v293 = vld [vmem:[#allocation7 + $0x18] sm:$0xff]
    %v294 = vld [vmem:[#allocation7 + $0x20] sm:$0xff]
    %v295 = vld [vmem:[#allocation7 + $0x28] sm:$0xff]
    %v296 = vld [vmem:[#allocation7 + $0x30] sm:$0xff]
    %v297 = vld [vmem:[#allocation7 + $0x38] sm:$0xff]
    %v298 = vld [vmem:[#allocation7 + $0x40] sm:$0xff]
    %v299 = vld [vmem:[#allocation7 + $0x48] sm:$0xff]
    %v300 = vld [vmem:[#allocation7 + $0x50] sm:$0xff]
    %v301 = vld [vmem:[#allocation7 + $0x58] sm:$0xff]
    %v302 = vld [vmem:[#allocation7 + $0x60] sm:$0xff]
    %v303 = vld [vmem:[#allocation7 + $0x68] sm:$0xff]
    %v304 = vld [vmem:[#allocation7 + $0x70] sm:$0xff]
    %v305 = vld [vmem:[#allocation7 + $0x78] sm:$0xff]
    %v306 = vld [vmem:[%s5] sm:$0x1]
    %v308 = vlaneseq
    %v309 = vshrl.u32 %v308, 7
    %v310 = vsub.s32 0, %v309
    %v311 = vrot.slane %v306, %v310
    %313 = vmatprep.subr.mxu0 0.0
    %314 = vmatpush1.msra.mxu0 %v290
    %315 = vmatprep.subr.mxu0 0.0
    %316 = vmatpush1.msra.mxu0 %v291
    %317 = vmatprep.subr.mxu0 0.0
    %318 = vmatpush1.msra.mxu0 %v292
    %319 = vmatprep.subr.mxu0 0.0
    %320 = vmatpush1.msra.mxu0 %v293
    %321 = vmatprep.subr.mxu0 0.0
    %322 = vmatpush1.msra.mxu0 %v294
    %323 = vmatprep.subr.mxu0 0.0
    %324 = vmatpush1.msra.mxu0 %v295
    %325 = vmatprep.subr.mxu0 0.0
    %326 = vmatpush1.msra.mxu0 %v296
    %327 = vmatprep.subr.mxu0 0.0
    %328 = vmatpush1.msra.mxu0 %v297
    %329 = vmatprep.subr.mxu0 0.0
    %330 = vmatpush1.msra.mxu0 %v298
    %331 = vmatprep.subr.mxu0 0.0
    %332 = vmatpush1.msra.mxu0 %v299
    %333 = vmatprep.subr.mxu0 0.0
    %334 = vmatpush1.msra.mxu0 %v300
    %335 = vmatprep.subr.mxu0 0.0
    %336 = vmatpush1.msra.mxu0 %v301
    %337 = vmatprep.subr.mxu0 0.0
    %338 = vmatpush1.msra.mxu0 %v302
    %339 = vmatprep.subr.mxu0 0.0
    %340 = vmatpush1.msra.mxu0 %v303
    %341 = vmatprep.subr.mxu0 0.0
    %342 = vmatpush1.msra.mxu0 %v304
    %343 = vmatprep.subr.mxu0 0.0
    %344 = vmatpush1.msra.mxu0 %v305
    %345 = vmatprep.subr.mxu0 0.0
    %346 = vmatpush1.msra.mxu0 0.0
    %347 = vmatprep.subr.mxu0 0.0
    %348 = vmatpush1.msra.mxu0 0.0
    %349 = vmatprep.subr.mxu0 0.0
    %350 = vmatpush1.msra.mxu0 0.0
    %351 = vmatprep.subr.mxu0 0.0
    %352 = vmatpush1.msra.mxu0 0.0
    %353 = vmatprep.subr.mxu0 0.0
    %354 = vmatpush1.msra.mxu0 0.0
    %355 = vmatprep.subr.mxu0 0.0
    %356 = vmatpush1.msra.mxu0 0.0
    %357 = vmatprep.subr.mxu0 0.0
    %358 = vmatpush1.msra.mxu0 0.0
    %359 = vmatprep.subr.mxu0 0.0
    %360 = vmatpush1.msra.mxu0 0.0
    %361 = vmatprep.subr.mxu0 0.0
    %362 = vmatpush1.msra.mxu0 0.0
    %363 = vmatprep.subr.mxu0 0.0
    %364 = vmatpush1.msra.mxu0 0.0
    %365 = vmatprep.subr.mxu0 0.0
    %366 = vmatpush1.msra.mxu0 0.0
    %367 = vmatprep.subr.mxu0 0.0
    %368 = vmatpush1.msra.mxu0 0.0
    %369 = vmatprep.subr.mxu0 0.0
    %370 = vmatpush1.msra.mxu0 0.0
    %371 = vmatprep.subr.mxu0 0.0
    %372 = vmatpush1.msra.mxu0 0.0
    %373 = vmatprep.subr.mxu0 0.0
    %374 = vmatpush1.msra.mxu0 0.0
    %375 = vmatprep.subr.mxu0 0.0
    %376 = vmatpush1.msra.mxu0 0.0
    %377 = vmatprep.mubr.f32.mxu0 0.0
    %378 = vmatmul.mubr.f32.gmra.mrb[0].mxu0 %v289
    %v379 = vpop.f32.mrb[0].mxu0
    %v380 = vadd.f32 %v311, %v379
    %v381 = vpop.f32.mrb[0].mxu0
    %382 = vdwg.mxu0
    %v383 = vmax.f32 %v380, 0.0
    %v384 = vld [vmem:[#allocation8] sm:$0xff]
    %v385 = vld [vmem:[#allocation8 + $0x8] sm:$0xff]
    %v386 = vld [vmem:[#allocation8 + $0x10] sm:$0xff]
    %v387 = vld [vmem:[#allocation8 + $0x18] sm:$0xff]
    %v388 = vld [vmem:[#allocation8 + $0x20] sm:$0xff]
    %v389 = vld [vmem:[#allocation8 + $0x28] sm:$0xff]
    %v390 = vld [vmem:[#allocation8 + $0x30] sm:$0xff]
    %v391 = vld [vmem:[#allocation8 + $0x38] sm:$0xff]
    %v392 = vld [vmem:[#allocation8 + $0x40] sm:$0xff]
    %v393 = vld [vmem:[#allocation8 + $0x48] sm:$0xff]
    %v394 = vld [vmem:[#allocation8 + $0x50] sm:$0xff]
    %v395 = vld [vmem:[#allocation8 + $0x58] sm:$0xff]
    %v396 = vld [vmem:[#allocation8 + $0x60] sm:$0xff]
    %v397 = vld [vmem:[#allocation8 + $0x68] sm:$0xff]
    %v398 = vld [vmem:[#allocation8 + $0x70] sm:$0xff]
    %v399 = vld [vmem:[#allocation8 + $0x78] sm:$0xff]
    %v400 = vld [vmem:[%s7] sm:$0x1]
    %v402 = vlaneseq
    %v403 = vshrl.u32 %v402, 7
    %v404 = vsub.s32 0, %v403
    %v405 = vrot.slane %v400, %v404
    %407 = vmatprep.subr.mxu0 0.0
    %408 = vmatpush1.msra.mxu0 %v384
    %409 = vmatprep.subr.mxu0 0.0
    %410 = vmatpush1.msra.mxu0 %v385
    %411 = vmatprep.subr.mxu0 0.0
    %412 = vmatpush1.msra.mxu0 %v386
    %413 = vmatprep.subr.mxu0 0.0
    %414 = vmatpush1.msra.mxu0 %v387
    %415 = vmatprep.subr.mxu0 0.0
    %416 = vmatpush1.msra.mxu0 %v388
    %417 = vmatprep.subr.mxu0 0.0
    %418 = vmatpush1.msra.mxu0 %v389
    %419 = vmatprep.subr.mxu0 0.0
    %420 = vmatpush1.msra.mxu0 %v390
    %421 = vmatprep.subr.mxu0 0.0
    %422 = vmatpush1.msra.mxu0 %v391
    %423 = vmatprep.subr.mxu0 0.0
    %424 = vmatpush1.msra.mxu0 %v392
    %425 = vmatprep.subr.mxu0 0.0
    %426 = vmatpush1.msra.mxu0 %v393
    %427 = vmatprep.subr.mxu0 0.0
    %428 = vmatpush1.msra.mxu0 %v394
    %429 = vmatprep.subr.mxu0 0.0
    %430 = vmatpush1.msra.mxu0 %v395
    %431 = vmatprep.subr.mxu0 0.0
    %432 = vmatpush1.msra.mxu0 %v396
    %433 = vmatprep.subr.mxu0 0.0
    %434 = vmatpush1.msra.mxu0 %v397
    %435 = vmatprep.subr.mxu0 0.0
    %436 = vmatpush1.msra.mxu0 %v398
    %437 = vmatprep.subr.mxu0 0.0
    %438 = vmatpush1.msra.mxu0 %v399
    %439 = vmatprep.subr.mxu0 0.0
    %440 = vmatpush1.msra.mxu0 0.0
    %441 = vmatprep.subr.mxu0 0.0
    %442 = vmatpush1.msra.mxu0 0.0
    %443 = vmatprep.subr.mxu0 0.0
    %444 = vmatpush1.msra.mxu0 0.0
    %445 = vmatprep.subr.mxu0 0.0
    %446 = vmatpush1.msra.mxu0 0.0
    %447 = vmatprep.subr.mxu0 0.0
    %448 = vmatpush1.msra.mxu0 0.0
    %449 = vmatprep.subr.mxu0 0.0
    %450 = vmatpush1.msra.mxu0 0.0
    %451 = vmatprep.subr.mxu0 0.0
    %452 = vmatpush1.msra.mxu0 0.0
    %453 = vmatprep.subr.mxu0 0.0
    %454 = vmatpush1.msra.mxu0 0.0
    %455 = vmatprep.subr.mxu0 0.0
    %456 = vmatpush1.msra.mxu0 0.0
    %457 = vmatprep.subr.mxu0 0.0
    %458 = vmatpush1.msra.mxu0 0.0
    %459 = vmatprep.subr.mxu0 0.0
    %460 = vmatpush1.msra.mxu0 0.0
    %461 = vmatprep.subr.mxu0 0.0
    %462 = vmatpush1.msra.mxu0 0.0
    %463 = vmatprep.subr.mxu0 0.0
    %464 = vmatpush1.msra.mxu0 0.0
    %465 = vmatprep.subr.mxu0 0.0
    %466 = vmatpush1.msra.mxu0 0.0
    %467 = vmatprep.subr.mxu0 0.0
    %468 = vmatpush1.msra.mxu0 0.0
    %469 = vmatprep.subr.mxu0 0.0
    %470 = vmatpush1.msra.mxu0 0.0
    %471 = vmatprep.mubr.f32.mxu0 0.0
    %472 = vmatmul.mubr.f32.gmra.mrb[0].mxu0 %v383
    %v473 = vpop.f32.mrb[0].mxu0
    %v474 = vadd.f32 %v405, %v473
    %v475 = vpop.f32.mrb[0].mxu0
    %476 = vdwg.mxu0
    %v477 = vxor.u32 %v474, 2147483648
    %v478 = vmul.f32 %v477, 1.442695
    %v479 = vpow.pop %v478
    %v480 = vadd.f32 %v479, 1.0
    %v481 = vrcp.pop %v480
    %v482 = vmul.f32 1.0, %v481
    %483 = vst [vmem:[#allocation10] sm:$0xff] %v482
    // Predicated region
    $region50: #{tpu_custom_call.1} parent=1 // pred_check
      _
    $region51: #{tpu_custom_call.1} parent=1 // pred_check_branch
      %485 = sbr.rel (0) target = $region53
    $region52: #{tpu_custom_call.1} parent=1 // pred_region
      %s487 = ssub.s32 128, 128
      %488 = vsyncadd [#allocation4], %s487
      %s490 = sshll.u32 [#allocation10], 4
      %s491 = int_to_ptr.vmem [resolvable:$true] %s490
      %493 = dma.vmem_to_hbm [thread:$0]  %s491, 128, %s8, [#allocation4]
    $region53: #{tpu_custom_call.1} parent=1 // pred_fallthru
      _
    // Predicated region
    $region54: #{tpu_custom_call.1} parent=1 // pred_check
      _
    $region55: #{tpu_custom_call.1} parent=1 // pred_check_branch
      %495 = sbr.rel (0) target = $region57
    $region56: #{tpu_custom_call.1} parent=1 // pred_region
      %496 = dma.done [#allocation4], 128
    $region57: #{tpu_custom_call.1} parent=1 // pred_fallthru
      _
    %497 = vsyncpa [#allocation3], 1
    %498 = vsyncpa [#allocation6], 1
    %499 = vsyncpa [#allocation9], 1
    %500 = vsyncpa [#allocation4], 1

</llo_original>
